<compile_context>
chip_gen: v6e
topology: v6e:2x2x1
jax: 0.10.0
libtpu: 0.0.40
codegen_flags: <defaults>
</compile_context>

<pallas_src>
import jax
import jax.numpy as jnp
from jax.experimental import pallas as pl
from jax.experimental.pallas import tpu as pltpu


def _mlp_kernel(x_ref, w1_ref, b1_ref, w2_ref, b2_ref, o_ref):
    # x_ref  : (TM, I)  natural-layout batch tile
    # w1_ref : (H, I)   0.5 * W1, VMEM-resident across the grid
    # b1_ref : (H, 1)   0.5 * b1 as a column (lane-broadcast)
    # w2_ref : (H, 1)   0.5 * W2 as a column
    # b2_ref : (1, 1)   b2 + 0.5*sum(W2), scalar in SMEM
    # o_ref  : (1, TM)  lane-dense output tile
    #
    # Hidden layer on the MXU: contract both operands on their last dim (I),
    # i.e. W1' @ x_tile^T without materializing any transpose. Result is
    # (H, TM) with the batch on lanes.
    z = jax.lax.dot_general(
        w1_ref[...], x_ref[...],
        dimension_numbers=(((1,), (1,)), ((), ())),
        preferred_element_type=jnp.float32,
    )
    # Folded sigmoid: sigmoid(2z') = 0.5*(tanh(z')+1); the 0.5 / +1 constants
    # were absorbed into w2'/b2' in the wrapper, so only a tanh (EUP) remains.
    t = jnp.tanh(z + b1_ref[...])                           # (H, TM)
    # Output layer: VPU multiply + sublane (XLU) reduce instead of a
    # 1-lane-wide MXU matmul.
    out = jnp.sum(t * w2_ref[...], axis=0, keepdims=True)   # (1, TM)
    o_ref[...] = out + b2_ref[0, 0]


def _round_up(a, b):
    return ((a + b - 1) // b) * b


def network_forward(x, w1, b1, w2, b2, *, tm=None):
    """x: (N, input_size) f32; PyTorch-layout weights. Returns (N, 1) f32."""
    n, in_sz = x.shape
    hid = w1.shape[0]

    # Adaptive batch tile:
    #  - small N: one tile == the whole batch (block == array, no constraints)
    #  - large N: >= 2 grid steps (v7x megacore + DMA/compute overlap) of at
    #    most 8192 rows, rounded to 512 so tiles stay (8,128)-aligned and the
    #    final partial tile wastes little.
    if tm is None:
        if n <= 512:
            tm = n
        else:
            tm = min(8192, _round_up(pl.cdiv(n, 2), 512))
    g = pl.cdiv(n, tm)

    # Fold the sigmoid 0.5*(tanh(z/2)+1) constants into the tiny (O(H*I)),
    # batch-invariant parameters — done once in XLA, amortized over all N.
    w1_s = (0.5 * w1).astype(jnp.float32)                        # (H, I)
    b1_col = (0.5 * b1).reshape(hid, 1).astype(jnp.float32)      # (H, 1)
    w2_col = (0.5 * w2).reshape(hid, 1).astype(jnp.float32)      # (H, 1)
    b2_sc = (b2 + 0.5 * jnp.sum(w2)).reshape(1, 1).astype(jnp.float32)

    out = pl.pallas_call(
        _mlp_kernel,
        out_shape=jax.ShapeDtypeStruct((1, n), jnp.float32),
        grid=(g,),
        in_specs=[
            pl.BlockSpec((tm, in_sz), lambda i: (i, 0)),    # new batch tile per step
            pl.BlockSpec((hid, in_sz), lambda i: (0, 0)),   # weights stay resident
            pl.BlockSpec((hid, 1), lambda i: (0, 0)),
            pl.BlockSpec((hid, 1), lambda i: (0, 0)),
            pl.BlockSpec(memory_space=pltpu.MemorySpace.SMEM),  # scalar b2'
        ],
        out_specs=pl.BlockSpec((1, tm), lambda i: (0, i)),  # lane-dense output
        compiler_params=pltpu.CompilerParams(
            dimension_semantics=("parallel",),  # megacore sharding on v7x
        ),
    )(x, w1_s, b1_col, w2_col, b2_sc)

    return out.reshape(n, 1)


def init_params(key, input_size, hidden_size):
    """Deterministic PyTorch-style Linear init: U(-1/sqrt(fan_in), 1/sqrt(fan_in))."""
    k1, k2, k3, k4 = jax.random.split(key, 4)
    bound1 = 1.0 / jnp.sqrt(input_size)
    bound2 = 1.0 / jnp.sqrt(hidden_size)
    w1 = jax.random.uniform(k1, (hidden_size, input_size), jnp.float32, -bound1, bound1)
    b1 = jax.random.uniform(k2, (hidden_size,), jnp.float32, -bound1, bound1)
    w2 = jax.random.uniform(k3, (1, hidden_size), jnp.float32, -bound2, bound2)
    b2 = jax.random.uniform(k4, (1,), jnp.float32, -bound2, bound2)
    return w1, b1, w2, b2


if __name__ == "__main__":
    input_size = 16
    hidden_size = 32
    batch = 8

    key = jax.random.PRNGKey(0)
    k_x, k_p = jax.random.split(key)
    x = jax.random.normal(k_x, (batch, input_size), jnp.float32)
    w1, b1, w2, b2 = init_params(k_p, input_size, hidden_size)

    out = network_forward(x, w1, b1, w2, b2)
    out = jax.block_until_ready(out)

    # Pure-JAX reference check (f32 stand-in for the f64 PyTorch reference).
    h_ref = jax.nn.sigmoid(x @ w1.T + b1)
    ref = h_ref @ w2.T + b2
    assert out.shape == (batch, 1)
    assert jnp.allclose(out, ref, atol=1e-4, rtol=1e-4)

    print("KERNEL_OK")
</pallas_src>

<mosaic_0001>
module attributes {stable_mosaic.version = 11 : i64} {
  func.func @_mlp_kernel(%arg0: i32, %arg1: memref<8x16xf32, #tpu.memory_space<vmem>>, %arg2: memref<32x16xf32, #tpu.memory_space<vmem>>, %arg3: memref<32x1xf32, #tpu.memory_space<vmem>>, %arg4: memref<32x1xf32, #tpu.memory_space<vmem>>, %arg5: memref<1x1xf32, #tpu.memory_space<smem>>, %arg6: memref<1x8xf32, #tpu.memory_space<vmem>>) attributes {dimension_semantics = [#tpu.dimension_semantics<parallel>], iteration_bounds = array<i64: 1>, scalar_prefetch = 0 : i64, scratch_operands = 0 : i64, tpu.core_type = #tpu.core_type<tc>, window_params = [{transform_indices = @transform_0, window_bounds = array<i64: 8, 16>}, {pipeline_mode = #tpu.pipeline_mode<synchronous>, transform_indices = @transform_1, window_bounds = array<i64: 32, 16>}, {pipeline_mode = #tpu.pipeline_mode<synchronous>, transform_indices = @transform_2, window_bounds = array<i64: 32, 1>}, {pipeline_mode = #tpu.pipeline_mode<synchronous>, transform_indices = @transform_3, window_bounds = array<i64: 32, 1>}, {transform_indices = @transform_4, window_bounds = array<i64: 1, 1>}, {transform_indices = @transform_5, window_bounds = array<i64: 1, 8>}]} {
    %c0 = arith.constant 0 : index
    %c0_0 = arith.constant 0 : index
    %0 = vector.load %arg2[%c0, %c0_0] : memref<32x16xf32, #tpu.memory_space<vmem>>, vector<32x16xf32>
    %c0_1 = arith.constant 0 : index
    %c0_2 = arith.constant 0 : index
    %1 = vector.load %arg1[%c0_1, %c0_2] : memref<8x16xf32, #tpu.memory_space<vmem>>, vector<8x16xf32>
    %cst = arith.constant dense<0.000000e+00> : vector<32x8xf32>
    %2 = tpu.matmul %0, %1, %cst {dimension_numbers = #tpu.dot_dimension_numbers<[1], [1], [0], [0], [0, 0, 1, 0], [], []>} : vector<32x16xf32>, vector<8x16xf32>, vector<32x8xf32> -> vector<32x8xf32>
    %c0_3 = arith.constant 0 : index
    %c0_4 = arith.constant 0 : index
    %3 = vector.load %arg3[%c0_3, %c0_4] : memref<32x1xf32, #tpu.memory_space<vmem>>, vector<32x1xf32>
    %4 = vector.broadcast %3 : vector<32x1xf32> to vector<32x8xf32>
    %5 = arith.addf %2, %4 : vector<32x8xf32>
    %6 = math.tanh %5 : vector<32x8xf32>
    %c0_5 = arith.constant 0 : index
    %c0_6 = arith.constant 0 : index
    %7 = vector.load %arg4[%c0_5, %c0_6] : memref<32x1xf32, #tpu.memory_space<vmem>>, vector<32x1xf32>
    %8 = vector.broadcast %7 : vector<32x1xf32> to vector<32x8xf32>
    %9 = arith.mulf %6, %8 : vector<32x8xf32>
    %cst_7 = arith.constant dense<0.000000e+00> : vector<8xf32>
    %10 = vector.multi_reduction <add>, %9, %cst_7 [0] : vector<32x8xf32> to vector<8xf32>
    %11 = vector.shape_cast %10 : vector<8xf32> to vector<1x8xf32>
    %c0_8 = arith.constant 0 : index
    %c0_9 = arith.constant 0 : index
    %12 = memref.load %arg5[%c0_8, %c0_9] : memref<1x1xf32, #tpu.memory_space<smem>>
    %13 = vector.broadcast %12 : f32 to vector<1x8xf32>
    %14 = arith.addf %11, %13 : vector<1x8xf32>
    %c0_10 = arith.constant 0 : index
    %c0_11 = arith.constant 0 : index
    %15 = vector.load %arg6[%c0_10, %c0_11] : memref<1x8xf32, #tpu.memory_space<vmem>>, vector<1x8xf32>
    tpu.vector_store %arg6[%c0_10, %c0_11], %14 {strides = array<i32>} : memref<1x8xf32, #tpu.memory_space<vmem>>, vector<1x8xf32>,
    return
  }
  func.func @transform_0(%arg0: i32) -> (i32, i32) {
    %c0_i32 = arith.constant 0 : i32
    %c0_i32_0 = arith.constant 0 : i32
    return %arg0, %c0_i32 : i32, i32
  }
  func.func @transform_1(%arg0: i32) -> (i32, i32) {
    %c0_i32 = arith.constant 0 : i32
    %c0_i32_0 = arith.constant 0 : i32
    %c0_i32_1 = arith.constant 0 : i32
    return %c0_i32, %c0_i32_0 : i32, i32
  }
  func.func @transform_2(%arg0: i32) -> (i32, i32) {
    %c0_i32 = arith.constant 0 : i32
    %c0_i32_0 = arith.constant 0 : i32
    %c0_i32_1 = arith.constant 0 : i32
    return %c0_i32, %c0_i32_0 : i32, i32
  }
  func.func @transform_3(%arg0: i32) -> (i32, i32) {
    %c0_i32 = arith.constant 0 : i32
    %c0_i32_0 = arith.constant 0 : i32
    %c0_i32_1 = arith.constant 0 : i32
    return %c0_i32, %c0_i32_0 : i32, i32
  }
  func.func @transform_4(%arg0: i32) -> (i32, i32) {
    %c0_i32 = arith.constant 0 : i32
    %c0_i32_0 = arith.constant 0 : i32
    %c0_i32_1 = arith.constant 0 : i32
    return %c0_i32, %c0_i32_0 : i32, i32
  }
  func.func @transform_5(%arg0: i32) -> (i32, i32) {
    %c0_i32 = arith.constant 0 : i32
    %c0_i32_0 = arith.constant 0 : i32
    return %c0_i32, %arg0 : i32, i32
  }
}

</mosaic_0001>

<llo_original>
// kernel: tpu_custom_call.1
$region0: #{tpu_custom_call.1}
  #allocation0 [shape = 'u32[]', space=smem, size = 0x4, offset = 0x4, fixed_abs, tag = 'smem constant byte address 0x4 - core index']
  #allocation1 [shape = 'u32[144,128]{1,0:T(1,128)}', space=vmem, size = 0x12000, scoped, tag = 'internal scratch']
  #allocation2 [shape = 'f32[1,1]{1,0:T(1,128)S(6)}', space=smem, size = 0x200, scoped, tag = 'scoped memory for tpu_custom_call.1']
  %s0 = inlined_call_operand.vmem [shape: f32[8,16], index: 0, kind: input, shape index: {}]
  %s1 = inlined_call_operand.vmem [shape: f32[32,16], index: 1, kind: input, shape index: {}]
  %s2 = inlined_call_operand.vmem [shape: f32[32,1], index: 2, kind: input, shape index: {}]
  %s3 = inlined_call_operand.vmem [shape: f32[32,1], index: 3, kind: input, shape index: {}]
  %s4 = inlined_call_operand.<no memory space> [shape: f32[1,1], index: 4, kind: input, shape index: {}]
  %s5 = inlined_call_operand.hbm [shape: f32[1,8], index: 5, kind: output, shape index: {}]
  %s6 = sld [smem:[#allocation0]]
  $region30: #{tpu_custom_call.1} parent=0
    _
  %s8 = ssub.s32 1, %s6
  %s9 = scalar_select 0, %s8, %s6
  %10 = sst [smem:[#allocation2]] %s4
  $region1: #{tpu_custom_call.1} parent=0
    #allocation3 [shape = 'u8[512]{0}', space=vmem, size = 0x400, scoped, tag = 'output window, operand 0, single buffered']
    #allocation4 [shape = 's32[1]{0}', space=sflag, size = 0x4, scoped, tag = 'scoped memory for tpu_custom_call.1']
    %11 = vsyncpa [#allocation4], 0
    // Predicated region
    $region2: #{tpu_custom_call.1} parent=1 // pred_check
      _
    $region3: #{tpu_custom_call.1} parent=1 // pred_check_branch
      %13 = sbr.rel (0) target = $region5
    $region4: #{tpu_custom_call.1} parent=1 // pred_region
      _
    $region5: #{tpu_custom_call.1} parent=1 // pred_fallthru
      _
    // Predicated region
    $region6: #{tpu_custom_call.1} parent=1 // pred_check
      _
    $region7: #{tpu_custom_call.1} parent=1 // pred_check_branch
      %15 = sbr.rel (0) target = $region9
    $region8: #{tpu_custom_call.1} parent=1 // pred_region
      _
    $region9: #{tpu_custom_call.1} parent=1 // pred_fallthru
      _
    // Predicated region
    $region10: #{tpu_custom_call.1} parent=1 // pred_check
      _
    $region11: #{tpu_custom_call.1} parent=1 // pred_check_branch
      %17 = sbr.rel (0) target = $region13
    $region12: #{tpu_custom_call.1} parent=1 // pred_region
      _
    $region13: #{tpu_custom_call.1} parent=1 // pred_fallthru
      _
    // Predicated region
    $region14: #{tpu_custom_call.1} parent=1 // pred_check
      _
    $region15: #{tpu_custom_call.1} parent=1 // pred_check_branch
      %19 = sbr.rel (0) target = $region17
    $region16: #{tpu_custom_call.1} parent=1 // pred_region
      _
    $region17: #{tpu_custom_call.1} parent=1 // pred_fallthru
      _
    // Predicated region
    $region18: #{tpu_custom_call.1} parent=1 // pred_check
      _
    $region19: #{tpu_custom_call.1} parent=1 // pred_check_branch
      %21 = sbr.rel (0) target = $region21
    $region20: #{tpu_custom_call.1} parent=1 // pred_region
      _
    $region21: #{tpu_custom_call.1} parent=1 // pred_fallthru
      _
    %v22 = vld [vmem:[%s1] sm:$0xff]
    %v23 = vld [vmem:[%s1 + $0x8] sm:$0xff]
    %v24 = vld [vmem:[%s1 + $0x10] sm:$0xff]
    %v25 = vld [vmem:[%s1 + $0x18] sm:$0xff]
    %v26 = vld [vmem:[%s0] sm:$0xff]
    %v27 = vld [vmem:[%s2] sm:$0xff]
    %v28 = vld [vmem:[%s2 + $0x8] sm:$0xff]
    %v29 = vld [vmem:[%s2 + $0x10] sm:$0xff]
    %v30 = vld [vmem:[%s2 + $0x18] sm:$0xff]
    %32 = vset.pattern.permute.xlu0 0
    %33 = vperm.xlu0 %32, %v27
    %v34 = vpop.permute.xlu0 %33
    %37 = vset.pattern.permute.xlu0 0
    %38 = vperm.xlu0 %37, %v28
    %v39 = vpop.permute.xlu0 %38
    %42 = vset.pattern.permute.xlu0 0
    %43 = vperm.xlu0 %42, %v29
    %v44 = vpop.permute.xlu0 %43
    %47 = vset.pattern.permute.xlu0 0
    %48 = vperm.xlu0 %47, %v30
    %v49 = vpop.permute.xlu0 %48
    %vm51 = vcmask 130048
    %v53 = vsel %vm51, %v22, 0
    %v56 = vsel %vm51, %v23, 0
    %v59 = vsel %vm51, %v24, 0
    %v62 = vsel %vm51, %v25, 0
    %v65 = vsel %vm51, %v26, 0
    %67 = vmatprep.subr.mxu0 0.0
    %68 = vmatpush1.xpose.msra.mxu0 0.0
    %69 = vmatprep.subr.mxu0 0.0
    %70 = vmatpush1.xpose.msra.mxu0 0.0
    %71 = vmatprep.subr.mxu0 0.0
    %72 = vmatpush1.xpose.msra.mxu0 0.0
    %73 = vmatprep.subr.mxu0 0.0
    %74 = vmatpush1.xpose.msra.mxu0 0.0
    %75 = vmatprep.subr.mxu0 0.0
    %76 = vmatpush1.xpose.msra.mxu0 0.0
    %77 = vmatprep.subr.mxu0 0.0
    %78 = vmatpush1.xpose.msra.mxu0 0.0
    %79 = vmatprep.subr.mxu0 0.0
    %80 = vmatpush1.xpose.msra.mxu0 0.0
    %81 = vmatprep.subr.mxu0 0.0
    %82 = vmatpush1.xpose.msra.mxu0 0.0
    %83 = vmatprep.subr.mxu0 0.0
    %84 = vmatpush1.xpose.msra.mxu0 0.0
    %85 = vmatprep.subr.mxu0 0.0
    %86 = vmatpush1.xpose.msra.mxu0 0.0
    %87 = vmatprep.subr.mxu0 0.0
    %88 = vmatpush1.xpose.msra.mxu0 0.0
    %89 = vmatprep.subr.mxu0 0.0
    %90 = vmatpush1.xpose.msra.mxu0 0.0
    %91 = vmatprep.subr.mxu0 0.0
    %92 = vmatpush1.xpose.msra.mxu0 0.0
    %93 = vmatprep.subr.mxu0 0.0
    %94 = vmatpush1.xpose.msra.mxu0 0.0
    %95 = vmatprep.subr.mxu0 0.0
    %96 = vmatpush1.xpose.msra.mxu0 0.0
    %97 = vmatprep.subr.mxu0 0.0
    %98 = vmatpush1.xpose.msra.mxu0 %v65
    %99 = vmatprep.subr.mxu0 0.0
    %100 = vmatpush2.xpose.msra.mxu0 0.0
    %101 = vmatprep.subr.mxu0 0.0
    %102 = vmatpush2.xpose.msra.mxu0 0.0
    %103 = vmatprep.subr.mxu0 0.0
    %104 = vmatpush2.xpose.msra.mxu0 0.0
    %105 = vmatprep.subr.mxu0 0.0
    %106 = vmatpush2.xpose.msra.mxu0 0.0
    %107 = vmatprep.subr.mxu0 0.0
    %108 = vmatpush2.xpose.msra.mxu0 0.0
    %109 = vmatprep.subr.mxu0 0.0
    %110 = vmatpush2.xpose.msra.mxu0 0.0
    %111 = vmatprep.subr.mxu0 0.0
    %112 = vmatpush2.xpose.msra.mxu0 0.0
    %113 = vmatprep.subr.mxu0 0.0
    %114 = vmatpush2.xpose.msra.mxu0 0.0
    %115 = vmatprep.subr.mxu0 0.0
    %116 = vmatpush2.xpose.msra.mxu0 0.0
    %117 = vmatprep.subr.mxu0 0.0
    %118 = vmatpush2.xpose.msra.mxu0 0.0
    %119 = vmatprep.subr.mxu0 0.0
    %120 = vmatpush2.xpose.msra.mxu0 0.0
    %121 = vmatprep.subr.mxu0 0.0
    %122 = vmatpush2.xpose.msra.mxu0 0.0
    %123 = vmatprep.subr.mxu0 0.0
    %124 = vmatpush2.xpose.msra.mxu0 0.0
    %125 = vmatprep.subr.mxu0 0.0
    %126 = vmatpush2.xpose.msra.mxu0 0.0
    %127 = vmatprep.subr.mxu0 0.0
    %128 = vmatpush2.xpose.msra.mxu0 0.0
    %129 = vmatprep.subr.mxu0 0.0
    %130 = vmatpush2.xpose.msra.mxu0 0.0
    %131 = vmatprep.mubr.f32.mxu0 0.0
    %132 = vmatmul.mubr.f32.gmra.mxu0 %v53
    %v133 = vpop.f32.mrf.mxu0
    %v134 = vadd.f32 %v34, %v133
    %v135 = vpop.f32.mrf.mxu0
    %136 = vmatprep.mubr.f32.mxu0 0.0
    %137 = vmatmul.mubr.f32.gmra.mxu0 %v56
    %v138 = vpop.f32.mrf.mxu0
    %v139 = vadd.f32 %v39, %v138
    %v140 = vpop.f32.mrf.mxu0
    %141 = vmatprep.mubr.f32.mxu0 0.0
    %142 = vmatmul.mubr.f32.gmra.mxu0 %v59
    %v143 = vpop.f32.mrf.mxu0
    %v144 = vadd.f32 %v44, %v143
    %v145 = vpop.f32.mrf.mxu0
    %146 = vmatprep.mubr.f32.mxu0 0.0
    %147 = vmatmul.mubr.f32.gmra.mxu0 %v62
    %v148 = vpop.f32.mrf.mxu0
    %v149 = vadd.f32 %v49, %v148
    %v150 = vpop.f32.mrf.mxu0
    %151 = vdwg.mxu0
    %v152 = vtanh.pop %v134
    %v153 = vtanh.pop %v139
    %v154 = vtanh.pop %v144
    %v155 = vtanh.pop %v149
    %v156 = vld [vmem:[%s3] sm:$0xff]
    %v157 = vld [vmem:[%s3 + $0x8] sm:$0xff]
    %v158 = vld [vmem:[%s3 + $0x10] sm:$0xff]
    %v159 = vld [vmem:[%s3 + $0x18] sm:$0xff]
    %161 = vset.pattern.permute.xlu0 0
    %162 = vperm.xlu0 %161, %v156
    %v163 = vpop.permute.xlu0 %162
    %166 = vset.pattern.permute.xlu0 0
    %167 = vperm.xlu0 %166, %v157
    %v168 = vpop.permute.xlu0 %167
    %171 = vset.pattern.permute.xlu0 0
    %172 = vperm.xlu0 %171, %v158
    %v173 = vpop.permute.xlu0 %172
    %176 = vset.pattern.permute.xlu0 0
    %177 = vperm.xlu0 %176, %v159
    %v178 = vpop.permute.xlu0 %177
    %v180 = vmul.f32 %v152, %v163
    %v181 = vmul.f32 %v153, %v168
    %v182 = vmul.f32 %v154, %v173
    %v183 = vmul.f32 %v155, %v178
    %vm184 = vcmask 64512
    %v185 = vsel %vm184, %v180, 0.0
    %v186 = vsel %vm184, %v181, 0.0
    %v187 = vadd.f32 %v185, %v186
    %v188 = vsel %vm184, %v182, 0.0
    %v189 = vadd.f32 %v187, %v188
    %v190 = vsel %vm184, %v183, 0.0
    %v191 = vadd.f32 %v189, %v190
    %v192 = vrot.slane %v191, 4
    %v193 = vadd.f32 %v191, %v192
    %v194 = vrot.slane %v193, 2
    %v195 = vadd.f32 %v193, %v194
    %v196 = vrot.slane %v195, 1
    %v197 = vadd.f32 %v195, %v196
    %s198 = sld [smem:[#allocation2]]
    %v199 = vstv %s198
    %v200 = vadd.f32 %v197, %v199
    %vm201 = vcmask 57344
    %202 = vst.msk [vmem:[#allocation3] sm:$0x1] %vm201, %v200
    // Predicated region
    $region22: #{tpu_custom_call.1} parent=1 // pred_check
      _
    $region23: #{tpu_custom_call.1} parent=1 // pred_check_branch
      %204 = sbr.rel (0) target = $region25
    $region24: #{tpu_custom_call.1} parent=1 // pred_region
      %s206 = ssub.s32 16, 16
      %207 = vsyncadd [#allocation4], %s206
      %s209 = sshll.u32 [#allocation3], 4
      %s210 = int_to_ptr.vmem [resolvable:$true] %s209
      %212 = dma.vmem_to_hbm [thread:$0]  %s210, 16, %s5, [#allocation4]
    $region25: #{tpu_custom_call.1} parent=1 // pred_fallthru
      _
    // Predicated region
    $region26: #{tpu_custom_call.1} parent=1 // pred_check
      _
    $region27: #{tpu_custom_call.1} parent=1 // pred_check_branch
      %214 = sbr.rel (0) target = $region29
    $region28: #{tpu_custom_call.1} parent=1 // pred_region
      %215 = dma.done [#allocation4], 16
    $region29: #{tpu_custom_call.1} parent=1 // pred_fallthru
      _
    %216 = vsyncpa [#allocation4], 1

</llo_original>
